<compile_context>
chip_gen: v7x
topology: tpu7x:2x2x1
jax: 0.10.0
libtpu: 0.0.40
codegen_flags: <defaults>
</compile_context>

<pallas_src>
import functools
import math

import jax
import jax.numpy as jnp
import numpy as np
from jax.experimental import pallas as pl
from jax.experimental.pallas import tpu as pltpu


# ----------------------------------------------------------------------------
# hyperNet: positional grid -> per-pixel features, shape (y_dim*2, x_dim)
# Row order is (h, w) with w fastest (matches contiguous NCHW flattening).
# ----------------------------------------------------------------------------
def hyper_net_feats(x_dim: int, y_dim: int) -> jnp.ndarray:
    xs = jnp.arange(x_dim, dtype=jnp.float32) - (x_dim - 1) / 2.0    # (x_dim,)
    ys = jnp.arange(y_dim, dtype=jnp.float32) - (y_dim - 1) / 2.0    # (y_dim,)
    xx = jnp.repeat(xs[:, None], y_dim, axis=1)                      # (x_dim, y_dim)
    yy = jnp.repeat(ys[None, :], x_dim, axis=0)                      # (x_dim, y_dim)
    pos = jnp.stack([xx, yy], axis=-1)                               # (x_dim, y_dim, 2) == NCHW[0]
    # pos[c, h, w] -> feats[h*2 + w, c]
    return jnp.transpose(pos, (1, 2, 0)).reshape(y_dim * 2, x_dim)


# ----------------------------------------------------------------------------
# PKernel: per-pixel MLP 3 -> 16 -> 16 -> 4 -> ch_in*ch_out (four 1x1 convs)
# producing the dynamic conv weight.  Plain JAX (tiny parameter-generation glue).
# ----------------------------------------------------------------------------
def leaky_relu(x, slope=0.1):
    return jnp.where(x >= 0, x, slope * x)


def _dense(x, w, b):
    # HIGHEST precision: the weight-generating MLP is tiny and its output is the
    # conv kernel itself, so keep it faithful to the f32 torch reference.
    return jnp.dot(x, w.T, precision=jax.lax.Precision.HIGHEST) + b


def init_pkernel_params(key, ch_in, ch_out):
    num_c = ch_in * ch_out
    dims = [(16, 3), (16, 16), (4, 16), (num_c, 4)]   # (out_features, in_features)
    params = {}
    for idx, (out_f, in_f) in enumerate(dims, start=1):
        key, kw, kb = jax.random.split(key, 3)
        bound = 1.0 / math.sqrt(in_f)
        params[f"w{idx}"] = jax.random.uniform(
            kw, (out_f, in_f), jnp.float32, -bound, bound)
        params[f"b{idx}"] = jax.random.uniform(
            kb, (out_f,), jnp.float32, -bound, bound)
    return params


def pkernel_conv_weight(pos_feats, params, y_dim, ch_in, ch_out):
    """Runs PKernel and reshapes its output like p_conv's kernal.view(...).

    Returns weight in HWIO layout: (kH=y_dim, kW=2, ch_in, ch_out).
    """
    h = leaky_relu(_dense(pos_feats, params["w1"], params["b1"]))
    h = leaky_relu(_dense(h, params["w2"], params["b2"]))
    h = leaky_relu(_dense(h, params["w3"], params["b3"]))
    h = _dense(h, params["w4"], params["b4"])              # (y_dim*2, ch_in*ch_out)
    # h[hh*2+ww, o*ch_in + i]  ==  torch kernel[o, i, hh, ww]
    wk = h.reshape(y_dim, 2, ch_out, ch_in)                # (kH, kW, o, i)
    return jnp.transpose(wk, (0, 1, 3, 2))                 # (kH, kW, i, o)  HWIO


# ----------------------------------------------------------------------------
# Fused Pallas kernel: conv1 + ReLU + conv2 + ReLU for one NCHW image per step.
#   x_ref  : (1, Ci, H*W)   flat NCHW image (unpadded)
#   w1_ref : (Co, kH*kW*Ci) conv1 dynamic weight, column order (dy, dx, i)
#   w2_ref : (Co, kH*kW*Co) conv2 dynamic weight, column order (dy, dx, i)
#   o_ref  : (1, Co, H*W)   flat NCHW output (lane-dense)
#   xf_ref : (Ci, Lf)       VMEM scratch: flat 'same'-padded input
#   nf_ref : (Co, Lf)       VMEM scratch: flat 'same'-padded intermediate
#   col_ref: (Kmax, H*W)    VMEM scratch: im2col operand (shared by both convs)
# ----------------------------------------------------------------------------
def _hyper_block_kernel(x_ref, w1_ref, w2_ref, o_ref, xf_ref, nf_ref, col_ref, *,
                        H, W, kH, kW, Ci, Co, pad_t, pad_l):
    HW = H * W
    Lf = xf_ref.shape[-1]
    base = pad_t * W + pad_l                      # flat offset of the image interior
    taps = [(dy, dx) for dy in range(kH) for dx in range(kW)]

    # Column-wrap validity masks (depend only on dx).  2-D iota (TPU requirement).
    col = jax.lax.broadcasted_iota(jnp.int32, (1, HW), 1) % W
    masks = {}
    for dx in range(kW):
        if dx != pad_l:
            c_src = col + (dx - pad_l)
            masks[dx] = (c_src >= 0) & (c_src < W)

    def pad_flat(dst_ref, img, C):
        """Write a (C, H*W) image into the interior of the flat padded scratch.
        Only the pad border (prefix/suffix lanes) is zeroed -- every grid step,
        never program_id-gated (v7x megacore safe); the interior is overwritten."""
        if base > 0:
            dst_ref[:, :base] = jnp.zeros((C, base), jnp.float32)
        if base + HW < Lf:
            dst_ref[:, base + HW:] = jnp.zeros((C, Lf - base - HW), jnp.float32)
        dst_ref[:, base:base + HW] = img

    def im2col(src_ref, C):
        """Fill col_ref[:kH*kW*C] with the (K, H*W) im2col operand.  Each tap is a
        flat lane-shifted slice (dy folds into the flat index, dx is a lane offset)
        plus a column-wrap mask -> no 3-D reshapes/relayouts."""
        for t, (dy, dx) in enumerate(taps):
            s = dy * W + dx
            piece = src_ref[:, s:s + HW]                       # (C, H*W)
            if dx != pad_l:
                piece = jnp.where(masks[dx], piece, 0.0)
            col_ref[t * C:(t + 1) * C, :] = piece
        return col_ref[:kH * kW * C, :]

    # ----- conv1 + ReLU: ONE (Co, K1) @ (K1, H*W) MXU matmul -----
    pad_flat(xf_ref, x_ref[0].astype(jnp.float32), Ci)
    xcol = im2col(xf_ref, Ci)
    n1 = jnp.maximum(
        jnp.dot(w1_ref[...], xcol, preferred_element_type=jnp.float32), 0.0)

    # ----- conv2 + ReLU: intermediate stays in VMEM (no HBM round trip) -----
    pad_flat(nf_ref, n1, Co)
    ncol = im2col(nf_ref, Co)
    out = jnp.maximum(
        jnp.dot(w2_ref[...], ncol, preferred_element_type=jnp.float32), 0.0)

    o_ref[0] = out.astype(o_ref.dtype)                         # lane-dense (Co, H*W)


def fused_hyper_block_conv(x_nchw, wk1, wk2):
    """Two torch F.conv2d(padding='same') + ReLU, fused in one pallas_call.

    x_nchw: (B, Ci, H, W); wk1: (kH, kW, Ci, Co); wk2: (kH, kW, Co, Co) (HWIO).
    Returns (B, Co, H, W).
    """
    B, Ci, H, W = x_nchw.shape
    kH, kW, Ci2, Co = wk1.shape
    assert Ci == Ci2 and wk2.shape == (kH, kW, Co, Co)

    # torch 'same' padding: left/top = total // 2, extra on right/bottom.
    ph, pw = kH - 1, kW - 1
    pad_t, pad_l = ph // 2, pw // 2
    HW = H * W
    Lf = (H + ph) * W + pw                       # flat padded length (covers max tap shift)
    K1, K2 = kH * kW * Ci, kH * kW * Co
    Kmax = max(K1, K2)

    # NCHW stays NCHW end-to-end; these reshapes are contiguous (metadata only).
    x_flat = x_nchw.reshape(B, Ci, HW)
    # HWIO -> (Co, kH*kW*Cin); column order (dy, dx, i) matches the in-kernel im2col.
    w1 = wk1.reshape(K1, Co).T
    w2 = wk2.reshape(K2, Co).T

    kernel = functools.partial(
        _hyper_block_kernel, H=H, W=W, kH=kH, kW=kW, Ci=Ci, Co=Co,
        pad_t=pad_t, pad_l=pad_l)

    flops = 2 * B * HW * kH * kW * (Ci * Co + Co * Co)
    bytes_accessed = 4 * (B * Ci * HW + B * Co * HW + K1 * Co + K2 * Co)

    out_flat = pl.pallas_call(
        kernel,
        out_shape=jax.ShapeDtypeStruct((B, Co, HW), x_nchw.dtype),
        grid=(B,),
        in_specs=[
            pl.BlockSpec((1, Ci, HW), lambda b: (b, 0, 0)),
            pl.BlockSpec((Co, K1), lambda b: (0, 0)),
            pl.BlockSpec((Co, K2), lambda b: (0, 0)),
        ],
        out_specs=pl.BlockSpec((1, Co, HW), lambda b: (b, 0, 0)),
        scratch_shapes=[
            pltpu.VMEM((Ci, Lf), jnp.float32),     # flat 'same'-padded input
            pltpu.VMEM((Co, Lf), jnp.float32),     # flat 'same'-padded intermediate
            pltpu.VMEM((Kmax, HW), jnp.float32),   # im2col operand (shared)
        ],
        compiler_params=pltpu.CompilerParams(
            dimension_semantics=("parallel",)),
        cost_estimate=pl.CostEstimate(
            flops=flops, transcendentals=0, bytes_accessed=bytes_accessed),
    )(x_flat, w1, w2)

    return out_flat.reshape(B, Co, H, W)


# ----------------------------------------------------------------------------
# HyperBlock forward (act='relu', bn=False, do=0, multi=True, res=False)
# ----------------------------------------------------------------------------
def hyper_block_forward(x_nchw, p1, p2, x_dim, y_dim, ch_in, ch_out):
    pos_feats = hyper_net_feats(x_dim, y_dim)                          # (y_dim*2, x_dim)
    wk1 = pkernel_conv_weight(pos_feats, p1, y_dim, ch_in, ch_out)     # (kH, kW, ch_in, ch_out)
    wk2 = pkernel_conv_weight(pos_feats, p2, y_dim, ch_out, ch_out)    # (kH, kW, ch_out, ch_out)
    return fused_hyper_block_conv(x_nchw, wk1, wk2)
    # TODO(synk): bn / dropout / residual-concat branches are disabled in the
    # default HyperBlock config (bn=False, do=0, res=False) and are not implemented.


# ----------------------------------------------------------------------------
# References for correctness checks
# ----------------------------------------------------------------------------
def _conv_same_ref(x_nchw, wk):
    kH, kW, _, _ = wk.shape
    ph, pw = kH - 1, kW - 1
    pads = ((ph // 2, ph - ph // 2), (pw // 2, pw - pw // 2))
    w_oihw = jnp.transpose(wk, (3, 2, 0, 1))
    return jax.lax.conv_general_dilated(
        x_nchw, w_oihw, window_strides=(1, 1), padding=pads,
        dimension_numbers=("NCHW", "OIHW", "NCHW"),
        precision=jax.lax.Precision.HIGHEST)


def hyper_block_reference(x_nchw, p1, p2, x_dim, y_dim, ch_in, ch_out):
    pos_feats = hyper_net_feats(x_dim, y_dim)
    wk1 = pkernel_conv_weight(pos_feats, p1, y_dim, ch_in, ch_out)
    n = jnp.maximum(_conv_same_ref(x_nchw, wk1), 0.0)
    wk2 = pkernel_conv_weight(pos_feats, p2, y_dim, ch_out, ch_out)
    return jnp.maximum(_conv_same_ref(n, wk2), 0.0)


def _numpy_reference(x, p1, p2, x_dim, y_dim, ch_in, ch_out):
    """Independent numpy re-derivation of the torch HyperBlock semantics
    (hyperNet grid, PKernel MLP, contiguous .view() -> OIHW kernel, 'same' pad)."""
    x = np.asarray(x, np.float32)

    def hyper_pos(xd, yd):
        xs = np.arange(xd, dtype=np.float32) - (xd - 1) / 2.0
        ys = np.arange(yd, dtype=np.float32) - (yd - 1) / 2.0
        pos = np.zeros((xd, yd, 2), np.float32)
        pos[..., 0] = xs[:, None]
        pos[..., 1] = ys[None, :]
        return pos                                   # pos[c, hh, ww]

    def pkernel_weight(pos, params, ci, co):
        C, KH, KW = pos.shape
        feats = pos.reshape(C, KH * KW).T            # (KH*KW, C)
        lrelu = lambda a: np.where(a >= 0, a, 0.1 * a)
        h = feats
        h = lrelu(h @ np.asarray(params["w1"]).T + np.asarray(params["b1"]))
        h = lrelu(h @ np.asarray(params["w2"]).T + np.asarray(params["b2"]))
        h = lrelu(h @ np.asarray(params["w3"]).T + np.asarray(params["b3"]))
        h = h @ np.asarray(params["w4"]).T + np.asarray(params["b4"])   # (KH*KW, ci*co)
        k_chw = h.T.reshape(ci * co, KH, KW)
        return k_chw.reshape(co, ci, KH, KW)         # torch .view(-1, ci, KH, KW)

    def conv_same(xi, k):
        B, Ci, H, W = xi.shape
        Co, _, KH, KW = k.shape
        ph, pw = KH - 1, KW - 1
        pt, pb = ph // 2, ph - ph // 2
        pleft, pright = pw // 2, pw - pw // 2
        xp = np.pad(xi, ((0, 0), (0, 0), (pt, pb), (pleft, pright)))
        out = np.zeros((B, Co, H, W), np.float32)
        for dy in range(KH):
            for dx in range(KW):
                out += np.einsum("bihw,oi->bohw",
                                 xp[:, :, dy:dy + H, dx:dx + W], k[:, :, dy, dx])
        return out

    pos = hyper_pos(x_dim, y_dim)
    k1 = pkernel_weight(pos, p1, ch_in, ch_out)
    n = np.maximum(conv_same(x, k1), 0.0)
    k2 = pkernel_weight(pos, p2, ch_out, ch_out)
    return np.maximum(conv_same(n, k2), 0.0)


if __name__ == "__main__":
    def run_case(key, B, ch_in, ch_out, H, W, y_dim):
        x_dim = 3   # PKernel.conv1 expects 3 input channels -> x_dim fixed at 3
        key, kx, kp1, kp2 = jax.random.split(key, 4)
        x = jax.random.normal(kx, (B, ch_in, H, W), jnp.float32)
        p1 = init_pkernel_params(kp1, ch_in, ch_out)
        p2 = init_pkernel_params(kp2, ch_out, ch_out)

        fwd = jax.jit(hyper_block_forward, static_argnums=(3, 4, 5, 6))
        out = jax.block_until_ready(fwd(x, p1, p2, x_dim, y_dim, ch_in, ch_out))
        assert out.shape == (B, ch_out, H, W), out.shape

        # 1) lax-conv reference (same dynamic-weight path, HIGHEST precision).
        ref = jax.block_until_ready(
            hyper_block_reference(x, p1, p2, x_dim, y_dim, ch_in, ch_out))
        np.testing.assert_allclose(np.asarray(out), np.asarray(ref),
                                   rtol=2e-2, atol=2e-2)
        # 2) independent numpy re-derivation of the torch semantics (validates the
        #    hyperNet/PKernel layout, the .view() weight reinterpretation and the
        #    asymmetric 'same' padding).
        ref_np = _numpy_reference(x, p1, p2, x_dim, y_dim, ch_in, ch_out)
        np.testing.assert_allclose(np.asarray(out), ref_np, rtol=2e-2, atol=2e-2)
        return key

    key = jax.random.PRNGKey(0)
    # Default config: (3,2) dynamic kernel on a 16x16 image.
    key = run_case(key, B=2, ch_in=4, ch_out=8, H=16, W=16, y_dim=3)
    # Rectangular image + taller (5,2) dynamic kernel: exercises the asymmetric
    # 'same' padding and a different im2col/mask configuration.
    key = run_case(key, B=1, ch_in=4, ch_out=8, H=12, W=20, y_dim=5)
    print("KERNEL_OK")
</pallas_src>

<mosaic_0001>
module attributes {stable_mosaic.version = 11 : i64} {
  func.func @_hyper_block_kernel(%arg0: i32, %arg1: memref<1x4x256xf32, #tpu.memory_space<vmem>>, %arg2: memref<8x24xf32, #tpu.memory_space<vmem>>, %arg3: memref<8x48xf32, #tpu.memory_space<vmem>>, %arg4: memref<1x8x256xf32, #tpu.memory_space<vmem>>, %arg5: memref<4x289xf32, #tpu.memory_space<vmem>>, %arg6: memref<8x289xf32, #tpu.memory_space<vmem>>, %arg7: memref<48x256xf32, #tpu.memory_space<vmem>>) attributes {dimension_semantics = [#tpu.dimension_semantics<parallel>], iteration_bounds = array<i64: 2>, scalar_prefetch = 0 : i64, scratch_operands = 3 : i64, tpu.core_type = #tpu.core_type<tc>, window_params = [{transform_indices = @transform_0, window_bounds = array<i64: 1, 4, 256>}, {pipeline_mode = #tpu.pipeline_mode<synchronous>, transform_indices = @transform_1, window_bounds = array<i64: 8, 24>}, {pipeline_mode = #tpu.pipeline_mode<synchronous>, transform_indices = @transform_2, window_bounds = array<i64: 8, 48>}, {transform_indices = @transform_3, window_bounds = array<i64: 1, 8, 256>}]} {
    %0 = tpu.iota {dimensions = array<i32: 1>} : vector<1x256xi32>
    %c16_i32 = arith.constant 16 : i32
    %c0_i32 = arith.constant 0 : i32
    %1 = arith.cmpi eq, %c16_i32, %c0_i32 : i32
    %c1_i32 = arith.constant 1 : i32
    %2 = arith.select %1, %c1_i32, %c16_i32 : i32
    %3 = vector.broadcast %2 : i32 to vector<1x256xi32>
    %4 = arith.remsi %0, %3 : vector<1x256xi32>
    %c0_i32_0 = arith.constant 0 : i32
    %5 = vector.broadcast %c0_i32_0 : i32 to vector<1x256xi32>
    %6 = arith.cmpi ne, %4, %5 : vector<1x256xi32>
    %c0_i32_1 = arith.constant 0 : i32
    %7 = vector.broadcast %c0_i32_1 : i32 to vector<1x256xi32>
    %8 = arith.cmpi slt, %4, %7 : vector<1x256xi32>
    %c0_i32_2 = arith.constant 0 : i32
    %9 = arith.cmpi slt, %2, %c0_i32_2 : i32
    %10 = vector.broadcast %9 : i1 to vector<1x256xi1>
    %11 = vector.broadcast %10 : vector<1x256xi1> to vector<1x256xi1>
    %12 = arith.xori %8, %11 : vector<1x256xi1>
    %13 = arith.andi %12, %6 : vector<1x256xi1>
    %14 = vector.broadcast %2 : i32 to vector<1x256xi32>
    %15 = arith.addi %4, %14 : vector<1x256xi32>
    %16 = arith.select %13, %15, %4 : vector<1x256xi1>, vector<1x256xi32>
    %c1_i32_3 = arith.constant 1 : i32
    %17 = vector.broadcast %c1_i32_3 : i32 to vector<1x256xi32>
    %18 = arith.addi %16, %17 : vector<1x256xi32>
    %c0_i32_4 = arith.constant 0 : i32
    %19 = vector.broadcast %c0_i32_4 : i32 to vector<1x256xi32>
    %20 = arith.cmpi sge, %18, %19 : vector<1x256xi32>
    %c16_i32_5 = arith.constant 16 : i32
    %21 = vector.broadcast %c16_i32_5 : i32 to vector<1x256xi32>
    %22 = arith.cmpi slt, %18, %21 : vector<1x256xi32>
    %23 = arith.andi %20, %22 : vector<1x256xi1>
    %c0 = arith.constant 0 : index
    %c0_6 = arith.constant 0 : index
    %c0_7 = arith.constant 0 : index
    %24 = vector.load %arg1[%c0, %c0_6, %c0_7] : memref<1x4x256xf32, #tpu.memory_space<vmem>>, vector<1x4x256xf32>
    %25 = vector.shape_cast %24 : vector<1x4x256xf32> to vector<4x256xf32>
    %cst = arith.constant 0.000000e+00 : f32
    %26 = vector.broadcast %cst : f32 to vector<4x16xf32>
    %c0_8 = arith.constant 0 : index
    %c0_9 = arith.constant 0 : index
    %27 = vector.load %arg5[%c0_8, %c0_9] : memref<4x289xf32, #tpu.memory_space<vmem>>, vector<4x16xf32>
    tpu.vector_store %arg5[%c0_8, %c0_9], %26 {strides = array<i32>} : memref<4x289xf32, #tpu.memory_space<vmem>>, vector<4x16xf32>,
    %cst_10 = arith.constant 0.000000e+00 : f32
    %28 = vector.broadcast %cst_10 : f32 to vector<4x17xf32>
    %c0_11 = arith.constant 0 : index
    %c272 = arith.constant 272 : index
    %29 = vector.load %arg5[%c0_11, %c272] : memref<4x289xf32, #tpu.memory_space<vmem>>, vector<4x17xf32>
    tpu.vector_store %arg5[%c0_11, %c272], %28 {strides = array<i32>} : memref<4x289xf32, #tpu.memory_space<vmem>>, vector<4x17xf32>,
    %c0_12 = arith.constant 0 : index
    %c16 = arith.constant 16 : index
    %30 = vector.load %arg5[%c0_12, %c16] : memref<4x289xf32, #tpu.memory_space<vmem>>, vector<4x256xf32>
    tpu.vector_store %arg5[%c0_12, %c16], %25 {strides = array<i32>} : memref<4x289xf32, #tpu.memory_space<vmem>>, vector<4x256xf32>,
    %c0_13 = arith.constant 0 : index
    %c0_14 = arith.constant 0 : index
    %31 = vector.load %arg5[%c0_13, %c0_14] : memref<4x289xf32, #tpu.memory_space<vmem>>, vector<4x256xf32>
    %c0_15 = arith.constant 0 : index
    %c0_16 = arith.constant 0 : index
    %32 = vector.load %arg7[%c0_15, %c0_16] : memref<48x256xf32, #tpu.memory_space<vmem>>, vector<4x256xf32>
    tpu.vector_store %arg7[%c0_15, %c0_16], %31 {strides = array<i32>} : memref<48x256xf32, #tpu.memory_space<vmem>>, vector<4x256xf32>,
    %c0_17 = arith.constant 0 : index
    %c1 = arith.constant 1 : index
    %33 = vector.load %arg5[%c0_17, %c1] : memref<4x289xf32, #tpu.memory_space<vmem>>, vector<4x256xf32>
    %cst_18 = arith.constant 0.000000e+00 : f32
    %34 = vector.shape_cast %23 : vector<1x256xi1> to vector<1x256xi1>
    %35 = vector.broadcast %34 : vector<1x256xi1> to vector<4x256xi1>
    %36 = vector.broadcast %cst_18 : f32 to vector<4x256xf32>
    %37 = arith.select %35, %33, %36 : vector<4x256xi1>, vector<4x256xf32>
    %c4 = arith.constant 4 : index
    %c0_19 = arith.constant 0 : index
    %38 = vector.load %arg7[%c4, %c0_19] : memref<48x256xf32, #tpu.memory_space<vmem>>, vector<4x256xf32>
    tpu.vector_store %arg7[%c4, %c0_19], %37 {strides = array<i32>} : memref<48x256xf32, #tpu.memory_space<vmem>>, vector<4x256xf32>,
    %c0_20 = arith.constant 0 : index
    %c16_21 = arith.constant 16 : index
    %39 = vector.load %arg5[%c0_20, %c16_21] : memref<4x289xf32, #tpu.memory_space<vmem>>, vector<4x256xf32>
    %c8 = arith.constant 8 : index
    %c0_22 = arith.constant 0 : index
    %40 = vector.load %arg7[%c8, %c0_22] : memref<48x256xf32, #tpu.memory_space<vmem>>, vector<4x256xf32>
    tpu.vector_store %arg7[%c8, %c0_22], %39 {strides = array<i32>} : memref<48x256xf32, #tpu.memory_space<vmem>>, vector<4x256xf32>,
    %c0_23 = arith.constant 0 : index
    %c17 = arith.constant 17 : index
    %41 = vector.load %arg5[%c0_23, %c17] : memref<4x289xf32, #tpu.memory_space<vmem>>, vector<4x256xf32>
    %cst_24 = arith.constant 0.000000e+00 : f32
    %42 = vector.shape_cast %23 : vector<1x256xi1> to vector<1x256xi1>
    %43 = vector.broadcast %42 : vector<1x256xi1> to vector<4x256xi1>
    %44 = vector.broadcast %cst_24 : f32 to vector<4x256xf32>
    %45 = arith.select %43, %41, %44 : vector<4x256xi1>, vector<4x256xf32>
    %c12 = arith.constant 12 : index
    %c0_25 = arith.constant 0 : index
    %46 = vector.load %arg7[%c12, %c0_25] : memref<48x256xf32, #tpu.memory_space<vmem>>, vector<4x256xf32>
    tpu.vector_store %arg7[%c12, %c0_25], %45 {strides = array<i32>} : memref<48x256xf32, #tpu.memory_space<vmem>>, vector<4x256xf32>,
    %c0_26 = arith.constant 0 : index
    %c32 = arith.constant 32 : index
    %47 = vector.load %arg5[%c0_26, %c32] : memref<4x289xf32, #tpu.memory_space<vmem>>, vector<4x256xf32>
    %c16_27 = arith.constant 16 : index
    %c0_28 = arith.constant 0 : index
    %48 = vector.load %arg7[%c16_27, %c0_28] : memref<48x256xf32, #tpu.memory_space<vmem>>, vector<4x256xf32>
    tpu.vector_store %arg7[%c16_27, %c0_28], %47 {strides = array<i32>} : memref<48x256xf32, #tpu.memory_space<vmem>>, vector<4x256xf32>,
    %c0_29 = arith.constant 0 : index
    %c33 = arith.constant 33 : index
    %49 = vector.load %arg5[%c0_29, %c33] : memref<4x289xf32, #tpu.memory_space<vmem>>, vector<4x256xf32>
    %cst_30 = arith.constant 0.000000e+00 : f32
    %50 = vector.shape_cast %23 : vector<1x256xi1> to vector<1x256xi1>
    %51 = vector.broadcast %50 : vector<1x256xi1> to vector<4x256xi1>
    %52 = vector.broadcast %cst_30 : f32 to vector<4x256xf32>
    %53 = arith.select %51, %49, %52 : vector<4x256xi1>, vector<4x256xf32>
    %c20 = arith.constant 20 : index
    %c0_31 = arith.constant 0 : index
    %54 = vector.load %arg7[%c20, %c0_31] : memref<48x256xf32, #tpu.memory_space<vmem>>, vector<4x256xf32>
    tpu.vector_store %arg7[%c20, %c0_31], %53 {strides = array<i32>} : memref<48x256xf32, #tpu.memory_space<vmem>>, vector<4x256xf32>,
    %c0_32 = arith.constant 0 : index
    %c0_33 = arith.constant 0 : index
    %55 = vector.load %arg7[%c0_32, %c0_33] : memref<48x256xf32, #tpu.memory_space<vmem>>, vector<24x256xf32>
    %c0_34 = arith.constant 0 : index
    %c0_35 = arith.constant 0 : index
    %56 = vector.load %arg2[%c0_34, %c0_35] : memref<8x24xf32, #tpu.memory_space<vmem>>, vector<8x24xf32>
    %cst_36 = arith.constant dense<0.000000e+00> : vector<8x256xf32>
    %57 = tpu.matmul %56, %55, %cst_36 {dimension_numbers = #tpu.dot_dimension_numbers<[1], [0], [0], [1], [0, 0, 1, 1], [], []>} : vector<8x24xf32>, vector<24x256xf32>, vector<8x256xf32> -> vector<8x256xf32>
    %cst_37 = arith.constant 0.000000e+00 : f32
    %58 = vector.broadcast %cst_37 : f32 to vector<8x256xf32>
    %59 = arith.maximumf %57, %58 : vector<8x256xf32>
    %cst_38 = arith.constant 0.000000e+00 : f32
    %60 = vector.broadcast %cst_38 : f32 to vector<8x16xf32>
    %c0_39 = arith.constant 0 : index
    %c0_40 = arith.constant 0 : index
    %61 = vector.load %arg6[%c0_39, %c0_40] : memref<8x289xf32, #tpu.memory_space<vmem>>, vector<8x16xf32>
    tpu.vector_store %arg6[%c0_39, %c0_40], %60 {strides = array<i32>} : memref<8x289xf32, #tpu.memory_space<vmem>>, vector<8x16xf32>,
    %cst_41 = arith.constant 0.000000e+00 : f32
    %62 = vector.broadcast %cst_41 : f32 to vector<8x17xf32>
    %c0_42 = arith.constant 0 : index
    %c272_43 = arith.constant 272 : index
    %63 = vector.load %arg6[%c0_42, %c272_43] : memref<8x289xf32, #tpu.memory_space<vmem>>, vector<8x17xf32>
    tpu.vector_store %arg6[%c0_42, %c272_43], %62 {strides = array<i32>} : memref<8x289xf32, #tpu.memory_space<vmem>>, vector<8x17xf32>,
    %c0_44 = arith.constant 0 : index
    %c16_45 = arith.constant 16 : index
    %64 = vector.load %arg6[%c0_44, %c16_45] : memref<8x289xf32, #tpu.memory_space<vmem>>, vector<8x256xf32>
    tpu.vector_store %arg6[%c0_44, %c16_45], %59 {strides = array<i32>} : memref<8x289xf32, #tpu.memory_space<vmem>>, vector<8x256xf32>,
    %c0_46 = arith.constant 0 : index
    %c0_47 = arith.constant 0 : index
    %65 = vector.load %arg6[%c0_46, %c0_47] : memref<8x289xf32, #tpu.memory_space<vmem>>, vector<8x256xf32>
    %c0_48 = arith.constant 0 : index
    %c0_49 = arith.constant 0 : index
    %66 = vector.load %arg7[%c0_48, %c0_49] : memref<48x256xf32, #tpu.memory_space<vmem>>, vector<8x256xf32>
    tpu.vector_store %arg7[%c0_48, %c0_49], %65 {strides = array<i32>} : memref<48x256xf32, #tpu.memory_space<vmem>>, vector<8x256xf32>,
    %c0_50 = arith.constant 0 : index
    %c1_51 = arith.constant 1 : index
    %67 = vector.load %arg6[%c0_50, %c1_51] : memref<8x289xf32, #tpu.memory_space<vmem>>, vector<8x256xf32>
    %cst_52 = arith.constant 0.000000e+00 : f32
    %68 = vector.shape_cast %23 : vector<1x256xi1> to vector<1x256xi1>
    %69 = vector.broadcast %68 : vector<1x256xi1> to vector<8x256xi1>
    %70 = vector.broadcast %cst_52 : f32 to vector<8x256xf32>
    %71 = arith.select %69, %67, %70 : vector<8x256xi1>, vector<8x256xf32>
    %c8_53 = arith.constant 8 : index
    %c0_54 = arith.constant 0 : index
    %72 = vector.load %arg7[%c8_53, %c0_54] : memref<48x256xf32, #tpu.memory_space<vmem>>, vector<8x256xf32>
    tpu.vector_store %arg7[%c8_53, %c0_54], %71 {strides = array<i32>} : memref<48x256xf32, #tpu.memory_space<vmem>>, vector<8x256xf32>,
    %c0_55 = arith.constant 0 : index
    %c16_56 = arith.constant 16 : index
    %73 = vector.load %arg6[%c0_55, %c16_56] : memref<8x289xf32, #tpu.memory_space<vmem>>, vector<8x256xf32>
    %c16_57 = arith.constant 16 : index
    %c0_58 = arith.constant 0 : index
    %74 = vector.load %arg7[%c16_57, %c0_58] : memref<48x256xf32, #tpu.memory_space<vmem>>, vector<8x256xf32>
    tpu.vector_store %arg7[%c16_57, %c0_58], %73 {strides = array<i32>} : memref<48x256xf32, #tpu.memory_space<vmem>>, vector<8x256xf32>,
    %c0_59 = arith.constant 0 : index
    %c17_60 = arith.constant 17 : index
    %75 = vector.load %arg6[%c0_59, %c17_60] : memref<8x289xf32, #tpu.memory_space<vmem>>, vector<8x256xf32>
    %cst_61 = arith.constant 0.000000e+00 : f32
    %76 = vector.shape_cast %23 : vector<1x256xi1> to vector<1x256xi1>
    %77 = vector.broadcast %76 : vector<1x256xi1> to vector<8x256xi1>
    %78 = vector.broadcast %cst_61 : f32 to vector<8x256xf32>
    %79 = arith.select %77, %75, %78 : vector<8x256xi1>, vector<8x256xf32>
    %c24 = arith.constant 24 : index
    %c0_62 = arith.constant 0 : index
    %80 = vector.load %arg7[%c24, %c0_62] : memref<48x256xf32, #tpu.memory_space<vmem>>, vector<8x256xf32>
    tpu.vector_store %arg7[%c24, %c0_62], %79 {strides = array<i32>} : memref<48x256xf32, #tpu.memory_space<vmem>>, vector<8x256xf32>,
    %c0_63 = arith.constant 0 : index
    %c32_64 = arith.constant 32 : index
    %81 = vector.load %arg6[%c0_63, %c32_64] : memref<8x289xf32, #tpu.memory_space<vmem>>, vector<8x256xf32>
    %c32_65 = arith.constant 32 : index
    %c0_66 = arith.constant 0 : index
    %82 = vector.load %arg7[%c32_65, %c0_66] : memref<48x256xf32, #tpu.memory_space<vmem>>, vector<8x256xf32>
    tpu.vector_store %arg7[%c32_65, %c0_66], %81 {strides = array<i32>} : memref<48x256xf32, #tpu.memory_space<vmem>>, vector<8x256xf32>,
    %c0_67 = arith.constant 0 : index
    %c33_68 = arith.constant 33 : index
    %83 = vector.load %arg6[%c0_67, %c33_68] : memref<8x289xf32, #tpu.memory_space<vmem>>, vector<8x256xf32>
    %cst_69 = arith.constant 0.000000e+00 : f32
    %84 = vector.shape_cast %23 : vector<1x256xi1> to vector<1x256xi1>
    %85 = vector.broadcast %84 : vector<1x256xi1> to vector<8x256xi1>
    %86 = vector.broadcast %cst_69 : f32 to vector<8x256xf32>
    %87 = arith.select %85, %83, %86 : vector<8x256xi1>, vector<8x256xf32>
    %c40 = arith.constant 40 : index
    %c0_70 = arith.constant 0 : index
    %88 = vector.load %arg7[%c40, %c0_70] : memref<48x256xf32, #tpu.memory_space<vmem>>, vector<8x256xf32>
    tpu.vector_store %arg7[%c40, %c0_70], %87 {strides = array<i32>} : memref<48x256xf32, #tpu.memory_space<vmem>>, vector<8x256xf32>,
    %c0_71 = arith.constant 0 : index
    %c0_72 = arith.constant 0 : index
    %89 = vector.load %arg7[%c0_71, %c0_72] : memref<48x256xf32, #tpu.memory_space<vmem>>, vector<48x256xf32>
    %c0_73 = arith.constant 0 : index
    %c0_74 = arith.constant 0 : index
    %90 = vector.load %arg3[%c0_73, %c0_74] : memref<8x48xf32, #tpu.memory_space<vmem>>, vector<8x48xf32>
    %cst_75 = arith.constant dense<0.000000e+00> : vector<8x256xf32>
    %91 = tpu.matmul %90, %89, %cst_75 {dimension_numbers = #tpu.dot_dimension_numbers<[1], [0], [0], [1], [0, 0, 1, 1], [], []>} : vector<8x48xf32>, vector<48x256xf32>, vector<8x256xf32> -> vector<8x256xf32>
    %cst_76 = arith.constant 0.000000e+00 : f32
    %92 = vector.broadcast %cst_76 : f32 to vector<8x256xf32>
    %93 = arith.maximumf %91, %92 : vector<8x256xf32>
    %c0_77 = arith.constant 0 : index
    %c0_78 = arith.constant 0 : index
    %c0_79 = arith.constant 0 : index
    %94 = vector.load %arg4[%c0_77, %c0_78, %c0_79] : memref<1x8x256xf32, #tpu.memory_space<vmem>>, vector<1x8x256xf32>
    %95 = vector.shape_cast %94 : vector<1x8x256xf32> to vector<8x256xf32>
    %96 = vector.shape_cast %93 : vector<8x256xf32> to vector<1x8x256xf32>
    tpu.vector_store %arg4[%c0_77, %c0_78, %c0_79], %96 {strides = array<i32>} : memref<1x8x256xf32, #tpu.memory_space<vmem>>, vector<1x8x256xf32>,
    return
  }
  func.func @transform_0(%arg0: i32) -> (i32, i32, i32) {
    %c0_i32 = arith.constant 0 : i32
    %c0_i32_0 = arith.constant 0 : i32
    %c0_i32_1 = arith.constant 0 : i32
    return %arg0, %c0_i32, %c0_i32_0 : i32, i32, i32
  }
  func.func @transform_1(%arg0: i32) -> (i32, i32) {
    %c0_i32 = arith.constant 0 : i32
    %c0_i32_0 = arith.constant 0 : i32
    %c0_i32_1 = arith.constant 0 : i32
    return %c0_i32, %c0_i32_0 : i32, i32
  }
  func.func @transform_2(%arg0: i32) -> (i32, i32) {
    %c0_i32 = arith.constant 0 : i32
    %c0_i32_0 = arith.constant 0 : i32
    %c0_i32_1 = arith.constant 0 : i32
    return %c0_i32, %c0_i32_0 : i32, i32
  }
  func.func @transform_3(%arg0: i32) -> (i32, i32, i32) {
    %c0_i32 = arith.constant 0 : i32
    %c0_i32_0 = arith.constant 0 : i32
    %c0_i32_1 = arith.constant 0 : i32
    return %arg0, %c0_i32, %c0_i32_0 : i32, i32, i32
  }
}

</mosaic_0001>

<llo_original>
// kernel: hyper_block_forward.1
$region0: #{hyper_block_forward.1}
  #allocation0 [shape = 'u32[]', space=smem, size = 0x4, offset = 0x4, fixed_abs, tag = 'smem constant byte address 0x4 - core index']
  #allocation1 [shape = 'u32[144,128]{1,0:T(1,128)}', space=vmem, size = 0x12000, scoped, tag = 'internal scratch']
  #allocation2 [shape = 'f32[4,289]{1,0:T(4,128)}', space=vmem, size = 0x1800, scoped, tag = 'scratch operand']
  #allocation3 [shape = 'f32[8,289]{1,0:T(8,128)}', space=vmem, size = 0x3000, scoped, tag = 'scratch operand']
  #allocation4 [shape = 'f32[48,256]{1,0:T(8,128)}', space=vmem, size = 0xc000, scoped, tag = 'scratch operand']
  %s0 = inlined_call_operand.vmem [shape: f32[2,4,256], index: 0, kind: input, shape index: {}]
  %s1 = inlined_call_operand.vmem [shape: f32[8,24], index: 1, kind: input, shape index: {}]
  %s2 = inlined_call_operand.vmem [shape: f32[8,48], index: 2, kind: input, shape index: {}]
  %s3 = inlined_call_operand.vmem [shape: f32[2,8,256], index: 3, kind: output, shape index: {}]
  %s4 = sld [smem:[#allocation0]]
  $region45: #{hyper_block_forward.1} parent=0
    _
  %s6 = ssub.s32 1, %s4
  %s7 = scalar_select 0, %s6, %s4
  loop: start=0, step=1, limit=4
  $region2: #{hyper_block_forward.1} parent=0 // loop_pre_header
    _
  $region3: #{hyper_block_forward.1} parent=0 // loop_header
    %s9 = sphi 0, %s13
    %p10 = scmp.ge.s32.totalorder %s9, 4
    %s19 = sphi 0, %s21
    %s22 = sphi 0, %s19
    %s23 = sphi 0, %s22
    %s39 = sphi 0, %s23
    %s43 = sphi 0, %s43
    %s45 = sphi 0, %s43
    %s46 = sphi 0, %s45
    %s60 = sphi 0, %s46
    %s64 = sphi 0, %s64
    %s66 = sphi 0, %s64
    %s67 = sphi 0, %s66
    %s81 = sphi 0, %s67
    %s87 = sphi 0, %s89
    %s90 = sphi 0, %s87
    %s91 = sphi 0, %s90
    %s107 = sphi 0, %s91
  $region4: #{hyper_block_forward.1} parent=0 // loop_header_branch
    %12 = sbr.rel (%p10) target = $region8
  $region5: #{hyper_block_forward.1} parent=0 // loop_body
    %s14 = ssub.s32 %s9, 1
    %s15 = ssub.s32 %s9, 2
    %s16 = sadd.s32 %s9, 1
    %s17 = ssub.s32 %s9, %s16
    %p18 = scmp.eq.s32.totalorder %s17, 0
    %s20 = sadd.s32 %s19, 1
    %s21 = scalar_select %p18, %s19, %s20
    %p24 = pneg %p18
    %p25 = scmp.eq.s32.totalorder %s9, 1
    %p26 = por %p24, %p25
    %p27 = scmp.ne.s32.totalorder %s19, %s22
    %p28 = scmp.eq.s32.totalorder %s9, 0
    %p29 = por %p27, %p28
    %p30 = scmp.ne.s32.totalorder %s19, %s22
    %p31 = scmp.eq.s32.totalorder %s14, 1
    %p32 = por %p30, %p31
    %p33 = scmp.ne.s32.totalorder %s22, %s23
    %p34 = scmp.eq.s32.totalorder %s14, 0
    %p35 = por %p33, %p34
    %p36 = scmp.ne.s32.totalorder %s22, %s23
    %p37 = scmp.eq.s32.totalorder %s15, 1
    %p38 = por %p36, %p37
    %p40 = scmp.ne.s32.totalorder %s23, %s39
    %p41 = scmp.eq.s32.totalorder %s15, 0
    %p42 = por %p40, %p41
    %s44 = sadd.s32 %s43, 1
    %p47 = scmp.eq.s32.totalorder %s9, 1
    %p48 = scmp.ne.s32.totalorder %s43, %s45
    %p49 = scmp.eq.s32.totalorder %s9, 0
    %p50 = por %p48, %p49
    %p51 = scmp.ne.s32.totalorder %s43, %s45
    %p52 = scmp.eq.s32.totalorder %s14, 1
    %p53 = por %p51, %p52
    %p54 = scmp.ne.s32.totalorder %s45, %s46
    %p55 = scmp.eq.s32.totalorder %s14, 0
    %p56 = por %p54, %p55
    %p57 = scmp.ne.s32.totalorder %s45, %s46
    %p58 = scmp.eq.s32.totalorder %s15, 1
    %p59 = por %p57, %p58
    %p61 = scmp.ne.s32.totalorder %s46, %s60
    %p62 = scmp.eq.s32.totalorder %s15, 0
    %p63 = por %p61, %p62
    %s65 = sadd.s32 %s64, 1
    %p68 = scmp.eq.s32.totalorder %s9, 1
    %p69 = scmp.ne.s32.totalorder %s64, %s66
    %p70 = scmp.eq.s32.totalorder %s9, 0
    %p71 = por %p69, %p70
    %p72 = scmp.ne.s32.totalorder %s64, %s66
    %p73 = scmp.eq.s32.totalorder %s14, 1
    %p74 = por %p72, %p73
    %p75 = scmp.ne.s32.totalorder %s66, %s67
    %p76 = scmp.eq.s32.totalorder %s14, 0
    %p77 = por %p75, %p76
    %p78 = scmp.ne.s32.totalorder %s66, %s67
    %p79 = scmp.eq.s32.totalorder %s15, 1
    %p80 = por %p78, %p79
    %p82 = scmp.ne.s32.totalorder %s67, %s81
    %p83 = scmp.eq.s32.totalorder %s15, 0
    %p84 = por %p82, %p83
    %s85 = ssub.s32 %s9, %s16
    %p86 = scmp.eq.s32.totalorder %s85, 0
    %s88 = sadd.s32 %s87, 1
    %s89 = scalar_select %p86, %s87, %s88
    %p92 = pneg %p86
    %p93 = scmp.eq.s32.totalorder %s9, 1
    %p94 = por %p92, %p93
    %p95 = scmp.ne.s32.totalorder %s87, %s90
    %p96 = scmp.eq.s32.totalorder %s9, 0
    %p97 = por %p95, %p96
    %p98 = scmp.ne.s32.totalorder %s87, %s90
    %p99 = scmp.eq.s32.totalorder %s14, 1
    %p100 = por %p98, %p99
    %p101 = scmp.ne.s32.totalorder %s90, %s91
    %p102 = scmp.eq.s32.totalorder %s14, 0
    %p103 = por %p101, %p102
    %p104 = scmp.ne.s32.totalorder %s90, %s91
    %p105 = scmp.eq.s32.totalorder %s15, 1
    %p106 = por %p104, %p105
    %p108 = scmp.ne.s32.totalorder %s91, %s107
    %p109 = scmp.eq.s32.totalorder %s15, 0
    %p110 = por %p108, %p109
    %p111 = scmp.le.s32.totalorder 1, %s9
    %p112 = scmp.lt.s32.totalorder %s9, 3
    %p113 = pnand %p111, %p112
    %p114 = pneg %p113
    // Predicated region
    $region9: #{hyper_block_forward.1} parent=5 // pred_check
      _
    $region10: #{hyper_block_forward.1} parent=5 // pred_check_branch
      %116 = sbr.rel (%p113) target = $region12
    $region11: #{hyper_block_forward.1} parent=5 // pred_region
      %s117 = ssub.s32 %s9, 1
      // Predicated region
      $region13: #{hyper_block_forward.1} parent=11 // pred_check
        %p118 = pneg %p56
      $region14: #{hyper_block_forward.1} parent=11 // pred_check_branch
        %120 = sbr.rel (%p118) target = $region16
      $region15: #{hyper_block_forward.1} parent=11 // pred_region
        _
      $region16: #{hyper_block_forward.1} parent=11 // pred_fallthru
        _
      // Predicated region
      $region17: #{hyper_block_forward.1} parent=11 // pred_check
        %p121 = pneg %p77
      $region18: #{hyper_block_forward.1} parent=11 // pred_check_branch
        %123 = sbr.rel (%p121) target = $region20
      $region19: #{hyper_block_forward.1} parent=11 // pred_region
        _
      $region20: #{hyper_block_forward.1} parent=11 // pred_fallthru
        _
    $region12: #{hyper_block_forward.1} parent=5 // pred_fallthru
      _
    %p124 = scmp.lt.s32.totalorder %s9, 2
    // Predicated region
    $region21: #{hyper_block_forward.1} parent=5 // pred_check
      %p125 = pneg %p124
    $region22: #{hyper_block_forward.1} parent=5 // pred_check_branch
      %127 = sbr.rel (%p125) target = $region24
    $region23: #{hyper_block_forward.1} parent=5 // pred_region
      // Predicated region
      $region25: #{hyper_block_forward.1} parent=23 // pred_check
        %p128 = pneg %p29
      $region26: #{hyper_block_forward.1} parent=23 // pred_check_branch
        %130 = sbr.rel (%p128) target = $region28
      $region27: #{hyper_block_forward.1} parent=23 // pred_region
        %p131 = scmp.lt.s32.totalorder %s9, 1
        %s132 = scalar_select %p131, %s9, 1
        %s133 = smul.addr %s132, 2
        %s134 = smul.addr %s133, 4
        %s135 = scalar_lea.vmem %s0, %s134
      $region28: #{hyper_block_forward.1} parent=23 // pred_fallthru
        _
    $region24: #{hyper_block_forward.1} parent=5 // pred_fallthru
      _
    %p136 = scmp.le.s32.totalorder 1, %s9
    %p137 = scmp.lt.s32.totalorder %s9, 3
    %p138 = pnand %p136, %p137
    %p139 = pneg %p138
    // Predicated region
    $region29: #{hyper_block_forward.1} parent=5 // pred_check
      _
    $region30: #{hyper_block_forward.1} parent=5 // pred_check_branch
      %141 = sbr.rel (%p138) target = $region32
    $region31: #{hyper_block_forward.1} parent=5 // pred_region
      %s142 = ssub.s32 %s9, 1
      %p143 = scmp.lt.s32.totalorder %s14, 1
      %s144 = scalar_select %p143, %s14, 1
      %s145 = smul.addr %s144, 2
      %s146 = smul.addr %s145, 4
      %s147 = scalar_lea.vmem %s0, %s146
      %p148 = pneg %p35
      %p149 = pneg %p32
      %p150 = pneg %p56
      %p151 = pneg %p53
      %p152 = pneg %p77
      %p153 = pneg %p74
      %p154 = pneg %p103
      %p155 = pneg %p100
      %p156 = scmp.lt.s32.totalorder %s14, 1
      %s157 = scalar_select %p156, %s14, 1
      %s158 = smul.addr %s157, 2
      %s159 = smul.addr %s158, 8
      %s160 = scalar_lea.vmem %s3, %s159
      %p161 = scmp.lt.s32.totalorder %s14, 1
      %s162 = scalar_select %p161, %s14, 1
      %s163 = smul.addr %s162, 2
      %s164 = smul.addr %s163, 4
      %s165 = scalar_lea.vmem %s0, %s164
      %p166 = scmp.lt.s32.totalorder %s14, 1
      %s167 = scalar_select %p166, %s14, 1
      %s168 = smul.addr %s167, 2
      %s169 = smul.addr %s168, 8
      %s170 = scalar_lea.vmem %s3, %s169
      %v171 = vlaneseq
      %v172 = vand.u32 %v171, 127
      %v173 = vadd.s32 %v172, 128
      %vm174 = vcmp.lt.s32.totalorder %v172, 0
      %v175 = vsub.s32 0, %v172
      %v176 = vsel %vm174, %v175, %v172
      %v177 = vshrl.u32 %v176, 4
      %v178 = vand.u32 %v176, 15
      %v179 = vsub.s32 0, %v178
      %v180 = vsel %vm174, %v179, %v178
      %vm181 = vcmp.lt.s32.totalorder %v173, 0
      %v182 = vsub.s32 0, %v173
      %v183 = vsel %vm181, %v182, %v173
      %v184 = vshrl.u32 %v183, 4
      %v185 = vand.u32 %v183, 15
      %v186 = vsub.s32 0, %v185
      %v187 = vsel %vm181, %v186, %v185
      %vm188 = vcmp.ne.s32.totalorder %v180, 0
      %vm189 = vcmp.ne.s32.totalorder %v187, 0
      %vm190 = vcmp.lt.s32.totalorder %v180, 0
      %vm191 = vcmp.lt.s32.totalorder %v187, 0
      %vm192 = vmand %vm190, %vm188
      %vm193 = vmand %vm191, %vm189
      %v194 = vadd.s32 %v180, 16
      %v195 = vadd.s32 %v187, 16
      %v196 = vsel %vm192, %v194, %v180
      %v197 = vsel %vm193, %v195, %v187
      %v198 = vadd.s32 %v196, 1
      %v199 = vadd.s32 %v197, 1
      %vm200 = vcmp.ge.s32.totalorder %v198, 0
      %vm201 = vcmp.ge.s32.totalorder %v199, 0
      %vm202 = vcmp.lt.s32.totalorder %v198, 16
      %vm203 = vcmp.lt.s32.totalorder %v199, 16
      %vm204 = vmand %vm200, %vm202
      %vm205 = vmand %vm201, %vm203
      %v206 = vld [vmem:[%s165] sm:$0xff]
      %vm207 = vcmask 125952
      %208 = vst.msk [vmem:[#allocation2] sm:$0xf] %vm207, 0.0
      %vm209 = vcmask 265344
      %210 = vst.msk [vmem:[#allocation2 + $0x8] sm:$0xf] %vm209, 0.0
      %212 = vrot.lane.b32.xlu0 %v206, 16
      %v213 = vpop.permute.xlu0 %212
      %v214 = vrot.slane %v213, 4
      %vm215 = vcmask 130048
      %v216 = vsel %vm215, %v214, %v213
      %vm219 = vcmask 1043584
      %vm220 = vcmask 1047556
      %vm221 = vmor %vm220, %vm219
      %222 = vst.msk [vmem:[#allocation2] sm:$0xff] %vm221, %v216
      %223 = vst.msk [vmem:[#allocation2 + $0x8] sm:$0xf] %vm207, %v214
      %v224 = vld [vmem:[#allocation2] sm:$0xff]
      %v226 = vcombine.high %v224, %v224
      %228 = vst [vmem:[#allocation4] sm:$0xf] %v224
      %229 = vst [vmem:[#allocation4 + $0x8] sm:$0xf] %v226
      %v230 = vld [vmem:[#allocation2] sm:$0xff]
      %v231 = vld [vmem:[#allocation2 + $0x8] sm:$0xf]
      %v232 = vsel %vm204, 1, 0
      %v233 = vsel %vm205, 1, 0
      %vm234 = vcmp.eq.s32.totalorder %v232, 1
      %vm235 = vcmp.eq.s32.totalorder %v233, 1
      %v238 = vcombine.high %v230, %v230
      %239 = vrot.lane.b32.xlu0 %v230, 127
      %v240 = vpop.permute.xlu0 %239
      %241 = vrot.lane.b32.xlu0 %v238, 127
      %v242 = vpop.permute.xlu0 %241
      %243 = vrot.lane.b32.xlu0 %v231, 127
      %v244 = vpop.permute.xlu0 %243
      %vm245 = vcmask 1039360
      %v246 = vsel %vm245, %v240, %v242
      %v247 = vsel %vm245, %v242, %v244
      %v250 = vsel %vm234, %v246, 0.0
      %v251 = vsel %vm235, %v247, 0.0
      %v254 = vrot.slane %v250, 4
      %v255 = vrot.slane %v251, 4
      %258 = vst [vmem:[#allocation4] sm:$0xf0] %v254
      %259 = vst [vmem:[#allocation4 + $0x8] sm:$0xf0] %v255
      %v260 = vld [vmem:[#allocation2] sm:$0xff]
      %v261 = vld [vmem:[#allocation2 + $0x8] sm:$0xf]
      %v264 = vcombine.high %v260, %v260
      %265 = vrot.lane.b32.xlu0 %v260, 112
      %v266 = vpop.permute.xlu0 %265
      %267 = vrot.lane.b32.xlu0 %v264, 112
      %v268 = vpop.permute.xlu0 %267
      %269 = vrot.lane.b32.xlu0 %v261, 112
      %v270 = vpop.permute.xlu0 %269
      %vm271 = vcmask 916480
      %v272 = vsel %vm271, %v266, %v268
      %v273 = vsel %vm271, %v268, %v270
      %276 = vst [vmem:[#allocation4 + $0x10] sm:$0xf] %v272
      %277 = vst [vmem:[#allocation4 + $0x18] sm:$0xf] %v273
      %v278 = vld [vmem:[#allocation2] sm:$0xff]
      %v279 = vld [vmem:[#allocation2 + $0x8] sm:$0xf]
      %v282 = vcombine.high %v278, %v278
      %283 = vrot.lane.b32.xlu0 %v278, 111
      %v284 = vpop.permute.xlu0 %283
      %285 = vrot.lane.b32.xlu0 %v282, 111
      %v286 = vpop.permute.xlu0 %285
      %287 = vrot.lane.b32.xlu0 %v279, 111
      %v288 = vpop.permute.xlu0 %287
      %vm289 = vcmask 908288
      %v290 = vsel %vm289, %v284, %v286
      %v291 = vsel %vm289, %v286, %v288
      %v294 = vsel %vm234, %v290, 0.0
      %v295 = vsel %vm235, %v291, 0.0
      %v298 = vrot.slane %v294, 4
      %v299 = vrot.slane %v295, 4
      %302 = vst [vmem:[#allocation4 + $0x10] sm:$0xf0] %v298
      %303 = vst [vmem:[#allocation4 + $0x18] sm:$0xf0] %v299
      %v304 = vld [vmem:[#allocation2] sm:$0xff]
      %v305 = vld [vmem:[#allocation2 + $0x8] sm:$0xf]
      %v308 = vcombine.high %v304, %v304
      %309 = vrot.lane.b32.xlu0 %v304, 96
      %v310 = vpop.permute.xlu0 %309
      %311 = vrot.lane.b32.xlu0 %v308, 96
      %v312 = vpop.permute.xlu0 %311
      %313 = vrot.lane.b32.xlu0 %v305, 96
      %v314 = vpop.permute.xlu0 %313
      %vm315 = vcmask 785408
      %v316 = vsel %vm315, %v310, %v312
      %v317 = vsel %vm315, %v312, %v314
      %320 = vst [vmem:[#allocation4 + $0x20] sm:$0xf] %v316
      %321 = vst [vmem:[#allocation4 + $0x28] sm:$0xf] %v317
      %v322 = vld [vmem:[#allocation2] sm:$0xff]
      %v323 = vld [vmem:[#allocation2 + $0x8] sm:$0xf]
      %v326 = vcombine.high %v322, %v322
      %327 = vrot.lane.b32.xlu0 %v322, 95
      %v328 = vpop.permute.xlu0 %327
      %329 = vrot.lane.b32.xlu0 %v326, 95
      %v330 = vpop.permute.xlu0 %329
      %331 = vrot.lane.b32.xlu0 %v323, 95
      %v332 = vpop.permute.xlu0 %331
      %vm333 = vcmask 777216
      %v334 = vsel %vm333, %v328, %v330
      %v335 = vsel %vm333, %v330, %v332
      %v338 = vsel %vm234, %v334, 0.0
      %v339 = vsel %vm235, %v335, 0.0
      %v342 = vrot.slane %v338, 4
      %v343 = vrot.slane %v339, 4
      %346 = vst [vmem:[#allocation4 + $0x20] sm:$0xf0] %v342
      %347 = vst [vmem:[#allocation4 + $0x28] sm:$0xf0] %v343
      %v348 = vld [vmem:[#allocation4] sm:$0xff]
      %v349 = vld [vmem:[#allocation4 + $0x8] sm:$0xff]
      %v350 = vld [vmem:[#allocation4 + $0x10] sm:$0xff]
      %v351 = vld [vmem:[#allocation4 + $0x18] sm:$0xff]
      %v352 = vld [vmem:[#allocation4 + $0x20] sm:$0xff]
      %v353 = vld [vmem:[#allocation4 + $0x28] sm:$0xff]
      %v354 = vld [vmem:[%s1] sm:$0xff]
      %vm355 = vcmask 195584
      %v357 = vsel %vm355, %v354, 0
      %359 = vmatprep.subr.mxu0 %v349
      %360 = vmatpush1.msra.mxu0 %v348
      %361 = vmatprep.subr.mxu0 %v351
      %362 = vmatpush1.msra.mxu0 %v350
      %363 = vmatprep.subr.mxu0 %v353
      %364 = vmatpush1.msra.mxu0 %v352
      %365 = vmatprep.subr.mxu0 0.0
      %366 = vmatpush1.msra.mxu0 0.0
      %367 = vmatprep.subr.mxu0 0.0
      %368 = vmatpush1.msra.mxu0 0.0
      %369 = vmatprep.subr.mxu0 0.0
      %370 = vmatpush1.msra.mxu0 0.0
      %371 = vmatprep.subr.mxu0 0.0
      %372 = vmatpush1.msra.mxu0 0.0
      %373 = vmatprep.subr.mxu0 0.0
      %374 = vmatpush1.msra.mxu0 0.0
      %375 = vmatprep.subr.mxu0 0.0
      %376 = vmatpush1.msra.mxu0 0.0
      %377 = vmatprep.subr.mxu0 0.0
      %378 = vmatpush1.msra.mxu0 0.0
      %379 = vmatprep.subr.mxu0 0.0
      %380 = vmatpush1.msra.mxu0 0.0
      %381 = vmatprep.subr.mxu0 0.0
      %382 = vmatpush1.msra.mxu0 0.0
      %383 = vmatprep.subr.mxu0 0.0
      %384 = vmatpush1.msra.mxu0 0.0
      %385 = vmatprep.subr.mxu0 0.0
      %386 = vmatpush1.msra.mxu0 0.0
      %387 = vmatprep.subr.mxu0 0.0
      %388 = vmatpush1.msra.mxu0 0.0
      %389 = vmatprep.subr.mxu0 0.0
      %390 = vmatpush1.msra.mxu0 0.0
      %391 = vmatprep.subr.mxu0 0.0
      %392 = vmatpush1.msra.mxu0 0.0
      %393 = vmatprep.subr.mxu0 0.0
      %394 = vmatpush1.msra.mxu0 0.0
      %395 = vmatprep.subr.mxu0 0.0
      %396 = vmatpush1.msra.mxu0 0.0
      %397 = vmatprep.subr.mxu0 0.0
      %398 = vmatpush1.msra.mxu0 0.0
      %399 = vmatprep.subr.mxu0 0.0
      %400 = vmatpush1.msra.mxu0 0.0
      %401 = vmatprep.subr.mxu0 0.0
      %402 = vmatpush1.msra.mxu0 0.0
      %403 = vmatprep.subr.mxu0 0.0
      %404 = vmatpush1.msra.mxu0 0.0
      %405 = vmatprep.subr.mxu0 0.0
      %406 = vmatpush1.msra.mxu0 0.0
      %407 = vmatprep.subr.mxu0 0.0
      %408 = vmatpush1.msra.mxu0 0.0
      %409 = vmatprep.subr.mxu0 0.0
      %410 = vmatpush1.msra.mxu0 0.0
      %411 = vmatprep.subr.mxu0 0.0
      %412 = vmatpush1.msra.mxu0 0.0
      %413 = vmatprep.subr.mxu0 0.0
      %414 = vmatpush1.msra.mxu0 0.0
      %415 = vmatprep.subr.mxu0 0.0
      %416 = vmatpush1.msra.mxu0 0.0
      %417 = vmatprep.subr.mxu0 0.0
      %418 = vmatpush1.msra.mxu0 0.0
      %419 = vmatprep.subr.mxu0 0.0
      %420 = vmatpush1.msra.mxu0 0.0
      %421 = vmatprep.subr.mxu0 0.0
      %422 = vmatpush1.msra.mxu0 0.0
      %423 = vmatprep.mubr.f32.mxu0 0.0
      %424 = vmatmul.mubr.f32.gmra.mrb[0].mxu0 %v357
      %v425 = vpop.f32.mrb[0].mxu0
      %v426 = vadd.f32 0.0, %v425
      %v427 = vpop.f32.mrb[0].mxu0
      %v428 = vadd.f32 0.0, %v427
      %429 = vdwg.mxu0
      %v430 = vmax.f32 %v426, 0.0
      %v431 = vmax.f32 %v428, 0.0
      %432 = vst.msk [vmem:[#allocation3] sm:$0xff] %vm215, 0.0
      %vm433 = vcmask 269440
      %434 = vst.msk [vmem:[#allocation3 + $0x10] sm:$0xff] %vm433, 0.0
      %437 = vrot.lane.b32.xlu0 %v430, 16
      %v438 = vpop.permute.xlu0 %437
      %439 = vrot.lane.b32.xlu0 %v431, 16
      %v440 = vpop.permute.xlu0 %439
      %v441 = vsel %vm215, %v438, %v440
      %vm445 = vcmask 1047680
      %446 = vst.msk [vmem:[#allocation3] sm:$0xff] %vm445, %v438
      %447 = vst [vmem:[#allocation3 + $0x8] sm:$0xff] %v441
      %448 = vst.msk [vmem:[#allocation3 + $0x10] sm:$0xff] %vm215, %v440
      %v449 = vld [vmem:[#allocation3] sm:$0xff]
      %v450 = vld [vmem:[#allocation3 + $0x8] sm:$0xff]
      %451 = vst [vmem:[#allocation4] sm:$0xff] %v449
      %452 = vst [vmem:[#allocation4 + $0x8] sm:$0xff] %v450
      %v453 = vld [vmem:[#allocation3] sm:$0xff]
      %v454 = vld [vmem:[#allocation3 + $0x8] sm:$0xff]
      %v455 = vld [vmem:[#allocation3 + $0x10] sm:$0xff]
      %459 = vrot.lane.b32.xlu0 %v453, 127
      %v460 = vpop.permute.xlu0 %459
      %461 = vrot.lane.b32.xlu0 %v454, 127
      %v462 = vpop.permute.xlu0 %461
      %463 = vrot.lane.b32.xlu0 %v455, 127
      %v464 = vpop.permute.xlu0 %463
      %v465 = vsel %vm245, %v460, %v462
      %v466 = vsel %vm245, %v462, %v464
      %v469 = vsel %vm234, %v465, 0.0
      %v470 = vsel %vm235, %v466, 0.0
      %471 = vst [vmem:[#allocation4 + $0x10] sm:$0xff] %v469
      %472 = vst [vmem:[#allocation4 + $0x18] sm:$0xff] %v470
      %v473 = vld [vmem:[#allocation3] sm:$0xff]
      %v474 = vld [vmem:[#allocation3 + $0x8] sm:$0xff]
      %v475 = vld [vmem:[#allocation3 + $0x10] sm:$0xff]
      %479 = vrot.lane.b32.xlu0 %v473, 112
      %v480 = vpop.permute.xlu0 %479
      %481 = vrot.lane.b32.xlu0 %v474, 112
      %v482 = vpop.permute.xlu0 %481
      %483 = vrot.lane.b32.xlu0 %v475, 112
      %v484 = vpop.permute.xlu0 %483
      %v485 = vsel %vm271, %v480, %v482
      %v486 = vsel %vm271, %v482, %v484
      %489 = vst [vmem:[#allocation4 + $0x20] sm:$0xff] %v485
      %490 = vst [vmem:[#allocation4 + $0x28] sm:$0xff] %v486
      %v491 = vld [vmem:[#allocation3] sm:$0xff]
      %v492 = vld [vmem:[#allocation3 + $0x8] sm:$0xff]
      %v493 = vld [vmem:[#allocation3 + $0x10] sm:$0xff]
      %497 = vrot.lane.b32.xlu0 %v491, 111
      %v498 = vpop.permute.xlu0 %497
      %499 = vrot.lane.b32.xlu0 %v492, 111
      %v500 = vpop.permute.xlu0 %499
      %501 = vrot.lane.b32.xlu0 %v493, 111
      %v502 = vpop.permute.xlu0 %501
      %v503 = vsel %vm289, %v498, %v500
      %v504 = vsel %vm289, %v500, %v502
      %v507 = vsel %vm234, %v503, 0.0
      %v508 = vsel %vm235, %v504, 0.0
      %509 = vst [vmem:[#allocation4 + $0x30] sm:$0xff] %v507
      %510 = vst [vmem:[#allocation4 + $0x38] sm:$0xff] %v508
      %v511 = vld [vmem:[#allocation3] sm:$0xff]
      %v512 = vld [vmem:[#allocation3 + $0x8] sm:$0xff]
      %v513 = vld [vmem:[#allocation3 + $0x10] sm:$0xff]
      %517 = vrot.lane.b32.xlu0 %v511, 96
      %v518 = vpop.permute.xlu0 %517
      %519 = vrot.lane.b32.xlu0 %v512, 96
      %v520 = vpop.permute.xlu0 %519
      %521 = vrot.lane.b32.xlu0 %v513, 96
      %v522 = vpop.permute.xlu0 %521
      %v523 = vsel %vm315, %v518, %v520
      %v524 = vsel %vm315, %v520, %v522
      %527 = vst [vmem:[#allocation4 + $0x40] sm:$0xff] %v523
      %528 = vst [vmem:[#allocation4 + $0x48] sm:$0xff] %v524
      %v529 = vld [vmem:[#allocation3] sm:$0xff]
      %v530 = vld [vmem:[#allocation3 + $0x8] sm:$0xff]
      %v531 = vld [vmem:[#allocation3 + $0x10] sm:$0xff]
      %535 = vrot.lane.b32.xlu0 %v529, 95
      %v536 = vpop.permute.xlu0 %535
      %537 = vrot.lane.b32.xlu0 %v530, 95
      %v538 = vpop.permute.xlu0 %537
      %539 = vrot.lane.b32.xlu0 %v531, 95
      %v540 = vpop.permute.xlu0 %539
      %v541 = vsel %vm333, %v536, %v538
      %v542 = vsel %vm333, %v538, %v540
      %v545 = vsel %vm234, %v541, 0.0
      %v546 = vsel %vm235, %v542, 0.0
      %547 = vst [vmem:[#allocation4 + $0x50] sm:$0xff] %v545
      %548 = vst [vmem:[#allocation4 + $0x58] sm:$0xff] %v546
      %v549 = vld [vmem:[#allocation4] sm:$0xff]
      %v550 = vld [vmem:[#allocation4 + $0x8] sm:$0xff]
      %v551 = vld [vmem:[#allocation4 + $0x10] sm:$0xff]
      %v552 = vld [vmem:[#allocation4 + $0x18] sm:$0xff]
      %v553 = vld [vmem:[#allocation4 + $0x20] sm:$0xff]
      %v554 = vld [vmem:[#allocation4 + $0x28] sm:$0xff]
      %v555 = vld [vmem:[#allocation4 + $0x30] sm:$0xff]
      %v556 = vld [vmem:[#allocation4 + $0x38] sm:$0xff]
      %v557 = vld [vmem:[#allocation4 + $0x40] sm:$0xff]
      %v558 = vld [vmem:[#allocation4 + $0x48] sm:$0xff]
      %v559 = vld [vmem:[#allocation4 + $0x50] sm:$0xff]
      %v560 = vld [vmem:[#allocation4 + $0x58] sm:$0xff]
      %v561 = vld [vmem:[%s2] sm:$0xff]
      %vm562 = vcmask 392192
      %v564 = vsel %vm562, %v561, 0
      %566 = vmatprep.subr.mxu0 %v550
      %567 = vmatpush1.msra.mxu0 %v549
      %568 = vmatprep.subr.mxu0 %v552
      %569 = vmatpush1.msra.mxu0 %v551
      %570 = vmatprep.subr.mxu0 %v554
      %571 = vmatpush1.msra.mxu0 %v553
      %572 = vmatprep.subr.mxu0 %v556
      %573 = vmatpush1.msra.mxu0 %v555
      %574 = vmatprep.subr.mxu0 %v558
      %575 = vmatpush1.msra.mxu0 %v557
      %576 = vmatprep.subr.mxu0 %v560
      %577 = vmatpush1.msra.mxu0 %v559
      %578 = vmatprep.subr.mxu0 0.0
      %579 = vmatpush1.msra.mxu0 0.0
      %580 = vmatprep.subr.mxu0 0.0
      %581 = vmatpush1.msra.mxu0 0.0
      %582 = vmatprep.subr.mxu0 0.0
      %583 = vmatpush1.msra.mxu0 0.0
      %584 = vmatprep.subr.mxu0 0.0
      %585 = vmatpush1.msra.mxu0 0.0
      %586 = vmatprep.subr.mxu0 0.0
      %587 = vmatpush1.msra.mxu0 0.0
      %588 = vmatprep.subr.mxu0 0.0
      %589 = vmatpush1.msra.mxu0 0.0
      %590 = vmatprep.subr.mxu0 0.0
      %591 = vmatpush1.msra.mxu0 0.0
      %592 = vmatprep.subr.mxu0 0.0
      %593 = vmatpush1.msra.mxu0 0.0
      %594 = vmatprep.subr.mxu0 0.0
      %595 = vmatpush1.msra.mxu0 0.0
      %596 = vmatprep.subr.mxu0 0.0
      %597 = vmatpush1.msra.mxu0 0.0
      %598 = vmatprep.subr.mxu0 0.0
      %599 = vmatpush1.msra.mxu0 0.0
      %600 = vmatprep.subr.mxu0 0.0
      %601 = vmatpush1.msra.mxu0 0.0
      %602 = vmatprep.subr.mxu0 0.0
      %603 = vmatpush1.msra.mxu0 0.0
      %604 = vmatprep.subr.mxu0 0.0
      %605 = vmatpush1.msra.mxu0 0.0
      %606 = vmatprep.subr.mxu0 0.0
      %607 = vmatpush1.msra.mxu0 0.0
      %608 = vmatprep.subr.mxu0 0.0
      %609 = vmatpush1.msra.mxu0 0.0
      %610 = vmatprep.subr.mxu0 0.0
      %611 = vmatpush1.msra.mxu0 0.0
      %612 = vmatprep.subr.mxu0 0.0
      %613 = vmatpush1.msra.mxu0 0.0
      %614 = vmatprep.subr.mxu0 0.0
      %615 = vmatpush1.msra.mxu0 0.0
      %616 = vmatprep.subr.mxu0 0.0
      %617 = vmatpush1.msra.mxu0 0.0
      %618 = vmatprep.subr.mxu0 0.0
      %619 = vmatpush1.msra.mxu0 0.0
      %620 = vmatprep.subr.mxu0 0.0
      %621 = vmatpush1.msra.mxu0 0.0
      %622 = vmatprep.subr.mxu0 0.0
      %623 = vmatpush1.msra.mxu0 0.0
      %624 = vmatprep.subr.mxu0 0.0
      %625 = vmatpush1.msra.mxu0 0.0
      %626 = vmatprep.subr.mxu0 0.0
      %627 = vmatpush1.msra.mxu0 0.0
      %628 = vmatprep.subr.mxu0 0.0
      %629 = vmatpush1.msra.mxu0 0.0
      %630 = vmatprep.mubr.f32.mxu0 0.0
      %631 = vmatmul.mubr.f32.gmra.mrb[0].mxu0 %v564
      %v632 = vpop.f32.mrb[0].mxu0
      %v633 = vadd.f32 0.0, %v632
      %v634 = vpop.f32.mrb[0].mxu0
      %v635 = vadd.f32 0.0, %v634
      %636 = vdwg.mxu0
      %v637 = vmax.f32 %v633, 0.0
      %v638 = vmax.f32 %v635, 0.0
      %639 = vst [vmem:[%s170] sm:$0xff] %v637
      %640 = vst [vmem:[%s170 + $0x8] sm:$0xff] %v638
      %p641 = scmp.lt.s32.totalorder %s14, 1
      %s642 = scalar_select %p641, %s14, 1
      %s643 = smul.addr %s642, 2
      %s644 = smul.addr %s643, 8
      %s645 = scalar_lea.vmem %s3, %s644
      // Predicated region
      $region33: #{hyper_block_forward.1} parent=31 // pred_check
        %p646 = pneg %p100
      $region34: #{hyper_block_forward.1} parent=31 // pred_check_branch
        %648 = sbr.rel (%p646) target = $region36
      $region35: #{hyper_block_forward.1} parent=31 // pred_region
        _
      $region36: #{hyper_block_forward.1} parent=31 // pred_fallthru
        _
    $region32: #{hyper_block_forward.1} parent=5 // pred_fallthru
      _
    %p649 = scmp.le.s32.totalorder 2, %s9
    // Predicated region
    $region37: #{hyper_block_forward.1} parent=5 // pred_check
      %p650 = pneg %p649
    $region38: #{hyper_block_forward.1} parent=5 // pred_check_branch
      %652 = sbr.rel (%p650) target = $region40
    $region39: #{hyper_block_forward.1} parent=5 // pred_region
      %s653 = ssub.s32 %s9, 2
      // Predicated region
      $region41: #{hyper_block_forward.1} parent=39 // pred_check
        %p654 = pneg %p106
      $region42: #{hyper_block_forward.1} parent=39 // pred_check_branch
        %656 = sbr.rel (%p654) target = $region44
      $region43: #{hyper_block_forward.1} parent=39 // pred_region
        %p657 = scmp.lt.s32.totalorder %s15, 1
        %s658 = scalar_select %p657, %s15, 1
        %s659 = smul.addr %s658, 2
        %s660 = smul.addr %s659, 8
        %s661 = scalar_lea.vmem %s3, %s660
      $region44: #{hyper_block_forward.1} parent=39 // pred_fallthru
        _
    $region40: #{hyper_block_forward.1} parent=5 // pred_fallthru
      _
  $region6: #{hyper_block_forward.1} parent=0 // loop_footer
    %s13 = sadd.s32 1, %s9
  $region7: #{hyper_block_forward.1} parent=0 // loop_footer_branch
    %8 = sbr.rel target = $region3
  $region8: #{hyper_block_forward.1} parent=0 // loop_exit
    _

</llo_original>
